<compile_context>
chip_gen: v6e
topology: v6e:2x2x1
jax: 0.10.0
libtpu: 0.0.40
codegen_flags: <defaults>
</compile_context>

<pallas_src>
import jax
import jax.numpy as jnp
from jax.experimental import pallas as pl
from jax.experimental.pallas import tpu as pltpu

BATCH = 2
SEQ = 8
HIDDEN = 32           # distilbert hidden_size=768 in the real model
HALF = HIDDEN // 2
NUM_CATEGORIES = 8
VOCAB = 100
LN_EPS = 1e-5

# ---- packed parameter-slab layout (rows x 128 lanes, f32) -------------------
LANES = 128
B_TILE = 8                      # per-grid-step request tile (full sublane)
R_VEC = 0                       # rows 0..7: ln_g, ln_b, ab1, aw2_row, ab2,
                                #            b1_fused, b2_fused, b3_fused
R_AW1 = 8                       # (H, H)      attention layer-1 weight
R_W1F = R_AW1 + HIDDEN          # (H, 128)    fused head layer-1 [cat|amt|rec|0]
R_W2F = R_W1F + HIDDEN          # (128, 128)  block-diag fused head layer-2
R_W3F = R_W2F + LANES           # (128, 128)  block-diag fused head layer-3
PARAM_ROWS = R_W3F + LANES      # = 328


def _expense_head_kernel(seq_ref, p_ref, out_ref):
    x = seq_ref[...].astype(jnp.float32)                  # (Bt, S, H)
    B, S, H = x.shape

    # ---- static slices of the packed parameter slab ----
    ln_g = p_ref[0:1, 0:H]                                # (1, H)
    ln_b = p_ref[1:2, 0:H]
    ab1 = p_ref[2:3, 0:H]
    aw2r = p_ref[3:4, 0:H]                                # attention L2 as row
    ab2 = p_ref[4:5, 0:1]                                 # (1, 1)
    b1f = p_ref[5:6, :]                                   # (1, 128)
    b2f = p_ref[6:7, :]                                   # (1, 128)
    b3f = p_ref[7:8, :]                                   # (1, 128)
    aw1 = p_ref[R_AW1:R_AW1 + H, 0:H]                     # (H, H)
    w1f = p_ref[R_W1F:R_W1F + H, :]                       # (H, 128)
    w2f = p_ref[R_W2F:R_W2F + LANES, :]                   # (128, 128) blockdiag
    w3f = p_ref[R_W3F:R_W3F + LANES, :]                   # (128, 128) blockdiag

    # ---- nn.LayerNorm(hidden_size) over last dim ----
    mean = jnp.mean(x, axis=-1, keepdims=True)
    var = jnp.mean(jnp.square(x - mean), axis=-1, keepdims=True)
    xn = (x - mean) * jax.lax.rsqrt(var + LN_EPS)
    xn = xn * ln_g + ln_b                                 # (Bt, S, H)

    # ---- category_attention: Linear -> Tanh -> (row-dot) ----
    # Minor-dim-preserving reshape (H stays the lane dim): layout no-op.
    xn2 = xn.reshape(B * S, H)
    h = jnp.tanh(
        jnp.dot(xn2, aw1, preferred_element_type=jnp.float32) + ab1)
    # scores: VPU multiply + lane reduction instead of an N=1 MXU matmul.
    # Reshape the product (not h) back to 3-D; minor dim unchanged -> free.
    scores = jnp.sum((h * aw2r).reshape(B, S, H), axis=-1) + ab2   # (Bt, S)

    # softmax over the sequence axis
    scores = scores - jnp.max(scores, axis=-1, keepdims=True)
    e = jnp.exp(scores)
    attn_w = e / jnp.sum(e, axis=-1, keepdims=True)       # (Bt, S)

    # ---- attended_output = bmm(attn_w[:,None,:], xn)[:,0,:] ----
    attended = jnp.sum(attn_w[:, :, None] * xn, axis=1)   # (Bt, H)

    # ---- fused three-head MLP (3 lane-dense matmuls; dropout = identity) ----
    h1 = jnp.maximum(
        jnp.dot(attended, w1f, preferred_element_type=jnp.float32) + b1f, 0.0)
    h2 = jnp.maximum(
        jnp.dot(h1, w2f, preferred_element_type=jnp.float32) + b2f, 0.0)
    z = jnp.dot(h2, w3f, preferred_element_type=jnp.float32) + b3f  # (Bt, 128)

    # sigmoid only on the amount / recurring columns
    lane = jax.lax.broadcasted_iota(jnp.int32, z.shape, 1)
    sig_mask = (lane >= NUM_CATEGORIES) & (lane < NUM_CATEGORIES + 2)
    out_ref[...] = jnp.where(sig_mask, jax.nn.sigmoid(z), z)


def expense_heads(sequence_output, param_slab):
    """Run the Pallas kernel; returns (category_logits, amount, recurring).

    Accepts any number of requests; pads to a multiple of B_TILE and grids
    over request tiles so the weight slab is loaded once and kept in VMEM.
    """
    n = sequence_output.shape[0]
    num_tiles = pl.cdiv(n, B_TILE)
    n_pad = num_tiles * B_TILE
    seq = sequence_output
    if n_pad != n:
        pad = jnp.zeros((n_pad - n,) + sequence_output.shape[1:],
                        sequence_output.dtype)
        seq = jnp.concatenate([sequence_output, pad], axis=0)

    bytes_acc = 4 * (n_pad * SEQ * HIDDEN + PARAM_ROWS * LANES + n_pad * LANES)
    out = pl.pallas_call(
        _expense_head_kernel,
        out_shape=jax.ShapeDtypeStruct((n_pad, LANES), jnp.float32),
        grid_spec=pltpu.PrefetchScalarGridSpec(
            num_scalar_prefetch=0,
            grid=(num_tiles,),
            in_specs=[
                # per-step activation tile
                pl.BlockSpec((B_TILE, SEQ, HIDDEN), lambda i: (i, 0, 0)),
                # constant block index -> weight slab DMA'd once, VMEM-resident
                pl.BlockSpec((PARAM_ROWS, LANES), lambda i: (0, 0)),
            ],
            out_specs=pl.BlockSpec((B_TILE, LANES), lambda i: (i, 0)),
        ),
        compiler_params=pltpu.CompilerParams(
            dimension_semantics=("parallel",),      # v7x: split grid over 2 TCs
            vmem_limit_bytes=4 * 1024 * 1024),
        cost_estimate=pl.CostEstimate(
            flops=950_000 * num_tiles,
            transcendentals=2_300 * num_tiles,
            bytes_accessed=bytes_acc),
    )(seq, param_slab)

    cat = out[:n, :NUM_CATEGORIES]
    amt = out[:n, NUM_CATEGORIES:NUM_CATEGORIES + 1]
    rec = out[:n, NUM_CATEGORIES + 1:NUM_CATEGORIES + 2]
    return cat, amt, rec


def init_params(key):
    """Deterministic parameter init; weights stored as (in, out)."""
    def lin(k, fan_in, fan_out):
        kw, kb = jax.random.split(k)
        w = jax.random.normal(kw, (fan_in, fan_out), jnp.float32) * 0.05
        b = jax.random.normal(kb, (1, fan_out), jnp.float32) * 0.05
        return w, b

    keys = jax.random.split(key, 12)
    ln_g = jnp.ones((1, HIDDEN), jnp.float32)
    ln_b = jnp.zeros((1, HIDDEN), jnp.float32)
    aw1, ab1 = lin(keys[0], HIDDEN, HIDDEN)
    aw2, ab2 = lin(keys[1], HIDDEN, 1)
    cw1, cb1 = lin(keys[2], HIDDEN, HIDDEN)
    cw2, cb2 = lin(keys[3], HIDDEN, HALF)
    cw3, cb3 = lin(keys[4], HALF, NUM_CATEGORIES)
    mw1, mb1 = lin(keys[5], HIDDEN, HIDDEN)
    mw2, mb2 = lin(keys[6], HIDDEN, HALF)
    mw3, mb3 = lin(keys[7], HALF, 1)
    rw1, rb1 = lin(keys[8], HIDDEN, HIDDEN)
    rw2, rb2 = lin(keys[9], HIDDEN, HALF)
    rw3, rb3 = lin(keys[10], HALF, 1)
    return [ln_g, ln_b,
            aw1, ab1, aw2, ab2,
            cw1, cb1, cw2, cb2, cw3, cb3,
            mw1, mb1, mw2, mb2, mw3, mb3,
            rw1, rb1, rw2, rb2, rw3, rb3]


def pack_params(p):
    """Pack the 24 parameter arrays into one lane-dense (328, 128) f32 slab.

    Fused-head weights are padded with exact zeros to full 128-lane width so
    every MXU operand and intermediate inside the kernel is lane-dense.
    """
    (ln_g, ln_b, aw1, ab1, aw2, ab2,
     cw1, cb1, cw2, cb2, cw3, cb3,
     mw1, mb1, mw2, mb2, mw3, mb3,
     rw1, rb1, rw2, rb2, rw3, rb3) = p

    slab = jnp.zeros((PARAM_ROWS, LANES), jnp.float32)

    def put(s, r0, c0, a):
        return s.at[r0:r0 + a.shape[0], c0:c0 + a.shape[1]].set(a)

    # vector rows
    slab = put(slab, 0, 0, ln_g)
    slab = put(slab, 1, 0, ln_b)
    slab = put(slab, 2, 0, ab1)
    slab = put(slab, 3, 0, aw2.T)                         # (1, H)
    slab = put(slab, 4, 0, ab2)                           # (1, 1)
    # fused biases, zero-padded to 128 lanes
    slab = put(slab, 5, 0, cb1)
    slab = put(slab, 5, HIDDEN, mb1)
    slab = put(slab, 5, 2 * HIDDEN, rb1)
    slab = put(slab, 6, 0, cb2)
    slab = put(slab, 6, HALF, mb2)
    slab = put(slab, 6, 2 * HALF, rb2)
    slab = put(slab, 7, 0, cb3)
    slab = put(slab, 7, NUM_CATEGORIES, mb3)
    slab = put(slab, 7, NUM_CATEGORIES + 1, rb3)

    # matrices
    slab = put(slab, R_AW1, 0, aw1)                       # (H, H)
    # layer-1 fused: (H, 128) = [cw1 | mw1 | rw1 | 0]
    slab = put(slab, R_W1F, 0, cw1)
    slab = put(slab, R_W1F, HIDDEN, mw1)
    slab = put(slab, R_W1F, 2 * HIDDEN, rw1)
    # layer-2 fused block-diagonal, padded to (128, 128)
    slab = put(slab, R_W2F + 0 * HIDDEN, 0 * HALF, cw2)
    slab = put(slab, R_W2F + 1 * HIDDEN, 1 * HALF, mw2)
    slab = put(slab, R_W2F + 2 * HIDDEN, 2 * HALF, rw2)
    # layer-3 fused block-diagonal, padded to (128, 128)
    slab = put(slab, R_W3F + 0 * HALF, 0, cw3)
    slab = put(slab, R_W3F + 1 * HALF, NUM_CATEGORIES, mw3)
    slab = put(slab, R_W3F + 2 * HALF, NUM_CATEGORIES + 1, rw3)
    return slab


def reference(seq, p):
    """Pure-JAX reference mirroring the PyTorch forward (eval mode, unfused)."""
    (ln_g, ln_b, aw1, ab1, aw2, ab2,
     cw1, cb1, cw2, cb2, cw3, cb3,
     mw1, mb1, mw2, mb2, mw3, mb3,
     rw1, rb1, rw2, rb2, rw3, rb3) = p
    mean = jnp.mean(seq, -1, keepdims=True)
    var = jnp.mean((seq - mean) ** 2, -1, keepdims=True)
    xn = (seq - mean) / jnp.sqrt(var + LN_EPS) * ln_g + ln_b
    h = jnp.tanh(xn @ aw1 + ab1)
    scores = (h @ aw2 + ab2)[..., 0]
    w = jax.nn.softmax(scores, axis=1)
    att = jnp.einsum('bs,bsh->bh', w, xn)

    def mlp(x, w1, b1, w2, b2, w3, b3):
        h1 = jax.nn.relu(x @ w1 + b1)
        h2 = jax.nn.relu(h1 @ w2 + b2)
        return h2 @ w3 + b3

    return (mlp(att, cw1, cb1, cw2, cb2, cw3, cb3),
            jax.nn.sigmoid(mlp(att, mw1, mb1, mw2, mb2, mw3, mb3)),
            jax.nn.sigmoid(mlp(att, rw1, rb1, rw2, rb2, rw3, rb3)))


if __name__ == "__main__":
    key = jax.random.PRNGKey(0)
    k_ids, k_emb, k_pos, k_par, k_big = jax.random.split(key, 5)

    # Tokenized inputs (synthetic). attention_mask is only consumed by the
    # transformer backbone in the original module, so it does not affect the
    # head computation implemented here.
    input_ids = jax.random.randint(k_ids, (BATCH, SEQ), 0, VOCAB, jnp.int32)
    attention_mask = jnp.ones((BATCH, SEQ), jnp.int32)  # noqa: F841 (unused)

    # Deterministic stub for transformer.last_hidden_state (plain-JAX glue).
    embed = jax.random.normal(k_emb, (VOCAB, HIDDEN), jnp.float32) * 0.1
    pos = jax.random.normal(k_pos, (SEQ, HIDDEN), jnp.float32) * 0.02
    sequence_output = embed[input_ids] + pos[None, :, :]        # (B, S, H)

    params = init_params(k_par)
    param_slab = pack_params(params)

    # --- spec-consistent batch=2 check (pads to one 8-row grid step) ---
    cat_logits, amount_pred, recurring_pred = jax.block_until_ready(
        expense_heads(sequence_output, param_slab))
    ref_cat, ref_amt, ref_rec = reference(sequence_output, params)
    assert cat_logits.shape == (BATCH, NUM_CATEGORIES)
    assert amount_pred.shape == (BATCH, 1)
    assert recurring_pred.shape == (BATCH, 1)
    assert jnp.allclose(cat_logits, ref_cat, atol=1e-4, rtol=1e-4)
    assert jnp.allclose(amount_pred, ref_amt, atol=1e-4, rtol=1e-4)
    assert jnp.allclose(recurring_pred, ref_rec, atol=1e-4, rtol=1e-4)

    # --- throughput path: 16 requests -> multi-step grid; the weight slab is
    #     DMA'd once and re-used across grid steps (and across TCs on v7x). ---
    big_ids = jax.random.randint(k_big, (16, SEQ), 0, VOCAB, jnp.int32)
    big_seq = embed[big_ids] + pos[None, :, :]
    b_cat, b_amt, b_rec = jax.block_until_ready(
        expense_heads(big_seq, param_slab))
    r_cat, r_amt, r_rec = reference(big_seq, params)
    assert b_cat.shape == (16, NUM_CATEGORIES)
    assert jnp.allclose(b_cat, r_cat, atol=1e-4, rtol=1e-4)
    assert jnp.allclose(b_amt, r_amt, atol=1e-4, rtol=1e-4)
    assert jnp.allclose(b_rec, r_rec, atol=1e-4, rtol=1e-4)

    print("KERNEL_OK")
</pallas_src>

<mosaic_0001>
module attributes {stable_mosaic.version = 11 : i64} {
  func.func @_expense_head_kernel(%arg0: i32, %arg1: memref<8x8x32xf32, #tpu.memory_space<vmem>>, %arg2: memref<328x128xf32, #tpu.memory_space<vmem>>, %arg3: memref<8x128xf32, #tpu.memory_space<vmem>>) attributes {dimension_semantics = [#tpu.dimension_semantics<parallel>], iteration_bounds = array<i64: 1>, scalar_prefetch = 0 : i64, scratch_operands = 0 : i64, tpu.core_type = #tpu.core_type<tc>, window_params = [{transform_indices = @transform_0, window_bounds = array<i64: 8, 8, 32>}, {pipeline_mode = #tpu.pipeline_mode<synchronous>, transform_indices = @transform_1, window_bounds = array<i64: 328, 128>}, {transform_indices = @transform_2, window_bounds = array<i64: 8, 128>}]} {
    %c0 = arith.constant 0 : index
    %c0_0 = arith.constant 0 : index
    %c0_1 = arith.constant 0 : index
    %0 = vector.load %arg1[%c0, %c0_0, %c0_1] : memref<8x8x32xf32, #tpu.memory_space<vmem>>, vector<8x8x32xf32>
    %c0_2 = arith.constant 0 : index
    %c0_3 = arith.constant 0 : index
    %1 = vector.load %arg2[%c0_2, %c0_3] : memref<328x128xf32, #tpu.memory_space<vmem>>, vector<1x32xf32>
    %c1 = arith.constant 1 : index
    %c0_4 = arith.constant 0 : index
    %2 = vector.load %arg2[%c1, %c0_4] : memref<328x128xf32, #tpu.memory_space<vmem>>, vector<1x32xf32>
    %c2 = arith.constant 2 : index
    %c0_5 = arith.constant 0 : index
    %3 = vector.load %arg2[%c2, %c0_5] : memref<328x128xf32, #tpu.memory_space<vmem>>, vector<1x32xf32>
    %c3 = arith.constant 3 : index
    %c0_6 = arith.constant 0 : index
    %4 = vector.load %arg2[%c3, %c0_6] : memref<328x128xf32, #tpu.memory_space<vmem>>, vector<1x32xf32>
    %c4 = arith.constant 4 : index
    %c0_7 = arith.constant 0 : index
    %5 = vector.load %arg2[%c4, %c0_7] : memref<328x128xf32, #tpu.memory_space<vmem>>, vector<1x1xf32>
    %c5 = arith.constant 5 : index
    %c0_8 = arith.constant 0 : index
    %6 = vector.load %arg2[%c5, %c0_8] : memref<328x128xf32, #tpu.memory_space<vmem>>, vector<1x128xf32>
    %c6 = arith.constant 6 : index
    %c0_9 = arith.constant 0 : index
    %7 = vector.load %arg2[%c6, %c0_9] : memref<328x128xf32, #tpu.memory_space<vmem>>, vector<1x128xf32>
    %c7 = arith.constant 7 : index
    %c0_10 = arith.constant 0 : index
    %8 = vector.load %arg2[%c7, %c0_10] : memref<328x128xf32, #tpu.memory_space<vmem>>, vector<1x128xf32>
    %c8 = arith.constant 8 : index
    %c0_11 = arith.constant 0 : index
    %9 = vector.load %arg2[%c8, %c0_11] : memref<328x128xf32, #tpu.memory_space<vmem>>, vector<32x32xf32>
    %c40 = arith.constant 40 : index
    %c0_12 = arith.constant 0 : index
    %10 = vector.load %arg2[%c40, %c0_12] : memref<328x128xf32, #tpu.memory_space<vmem>>, vector<32x128xf32>
    %c72 = arith.constant 72 : index
    %c0_13 = arith.constant 0 : index
    %11 = vector.load %arg2[%c72, %c0_13] : memref<328x128xf32, #tpu.memory_space<vmem>>, vector<128x128xf32>
    %c200 = arith.constant 200 : index
    %c0_14 = arith.constant 0 : index
    %12 = vector.load %arg2[%c200, %c0_14] : memref<328x128xf32, #tpu.memory_space<vmem>>, vector<128x128xf32>
    %cst = arith.constant dense<0.000000e+00> : vector<8x8xf32>
    %13 = vector.multi_reduction <add>, %0, %cst [2] : vector<8x8x32xf32> to vector<8x8xf32>
    %14 = vector.shape_cast %13 : vector<8x8xf32> to vector<8x8x1xf32>
    %cst_15 = arith.constant 3.200000e+01 : f32
    %15 = vector.broadcast %cst_15 : f32 to vector<8x8x1xf32>
    %16 = arith.divf %14, %15 : vector<8x8x1xf32>
    %17 = vector.broadcast %16 : vector<8x8x1xf32> to vector<8x8x32xf32>
    %18 = arith.subf %0, %17 : vector<8x8x32xf32>
    %19 = arith.mulf %18, %18 : vector<8x8x32xf32>
    %cst_16 = arith.constant dense<0.000000e+00> : vector<8x8xf32>
    %20 = vector.multi_reduction <add>, %19, %cst_16 [2] : vector<8x8x32xf32> to vector<8x8xf32>
    %21 = vector.shape_cast %20 : vector<8x8xf32> to vector<8x8x1xf32>
    %cst_17 = arith.constant 3.200000e+01 : f32
    %22 = vector.broadcast %cst_17 : f32 to vector<8x8x1xf32>
    %23 = arith.divf %21, %22 : vector<8x8x1xf32>
    %24 = vector.broadcast %16 : vector<8x8x1xf32> to vector<8x8x32xf32>
    %25 = arith.subf %0, %24 : vector<8x8x32xf32>
    %cst_18 = arith.constant 9.99999974E-6 : f32
    %26 = vector.broadcast %cst_18 : f32 to vector<8x8x1xf32>
    %27 = arith.addf %23, %26 : vector<8x8x1xf32>
    %28 = math.rsqrt %27 : vector<8x8x1xf32>
    %29 = vector.broadcast %28 : vector<8x8x1xf32> to vector<8x8x32xf32>
    %30 = arith.mulf %25, %29 : vector<8x8x32xf32>
    %31 = vector.shape_cast %1 : vector<1x32xf32> to vector<1x1x32xf32>
    %32 = vector.broadcast %31 : vector<1x1x32xf32> to vector<8x8x32xf32>
    %33 = arith.mulf %30, %32 : vector<8x8x32xf32>
    %34 = vector.shape_cast %2 : vector<1x32xf32> to vector<1x1x32xf32>
    %35 = vector.broadcast %34 : vector<1x1x32xf32> to vector<8x8x32xf32>
    %36 = arith.addf %33, %35 : vector<8x8x32xf32>
    %37 = vector.shape_cast %36 : vector<8x8x32xf32> to vector<64x32xf32>
    %cst_19 = arith.constant dense<0.000000e+00> : vector<64x32xf32>
    %38 = tpu.matmul %37, %9, %cst_19 {dimension_numbers = #tpu.dot_dimension_numbers<[1], [0], [0], [1], [0, 0, 1, 1], [], []>} : vector<64x32xf32>, vector<32x32xf32>, vector<64x32xf32> -> vector<64x32xf32>
    %39 = vector.broadcast %3 : vector<1x32xf32> to vector<64x32xf32>
    %40 = arith.addf %38, %39 : vector<64x32xf32>
    %41 = math.tanh %40 : vector<64x32xf32>
    %42 = vector.broadcast %4 : vector<1x32xf32> to vector<64x32xf32>
    %43 = arith.mulf %41, %42 : vector<64x32xf32>
    %44 = vector.shape_cast %43 : vector<64x32xf32> to vector<8x8x32xf32>
    %cst_20 = arith.constant dense<0.000000e+00> : vector<8x8xf32>
    %45 = vector.multi_reduction <add>, %44, %cst_20 [2] : vector<8x8x32xf32> to vector<8x8xf32>
    %46 = vector.broadcast %5 : vector<1x1xf32> to vector<8x8xf32>
    %47 = arith.addf %45, %46 : vector<8x8xf32>
    %cst_21 = arith.constant dense<0xFF800000> : vector<8xf32>
    %48 = vector.multi_reduction <maximumf>, %47, %cst_21 [1] : vector<8x8xf32> to vector<8xf32>
    %49 = vector.shape_cast %48 : vector<8xf32> to vector<8x1xf32>
    %50 = vector.broadcast %49 : vector<8x1xf32> to vector<8x8xf32>
    %51 = arith.subf %47, %50 : vector<8x8xf32>
    %52 = math.exp %51 : vector<8x8xf32>
    %cst_22 = arith.constant dense<0.000000e+00> : vector<8xf32>
    %53 = vector.multi_reduction <add>, %52, %cst_22 [1] : vector<8x8xf32> to vector<8xf32>
    %54 = vector.shape_cast %53 : vector<8xf32> to vector<8x1xf32>
    %55 = vector.broadcast %54 : vector<8x1xf32> to vector<8x8xf32>
    %56 = arith.divf %52, %55 : vector<8x8xf32>
    %57 = vector.shape_cast %56 : vector<8x8xf32> to vector<8x8x1xf32>
    %58 = vector.broadcast %57 : vector<8x8x1xf32> to vector<8x8x32xf32>
    %59 = arith.mulf %58, %36 : vector<8x8x32xf32>
    %cst_23 = arith.constant dense<0.000000e+00> : vector<8x32xf32>
    %60 = vector.multi_reduction <add>, %59, %cst_23 [1] : vector<8x8x32xf32> to vector<8x32xf32>
    %cst_24 = arith.constant dense<0.000000e+00> : vector<8x128xf32>
    %61 = tpu.matmul %60, %10, %cst_24 {dimension_numbers = #tpu.dot_dimension_numbers<[1], [0], [0], [1], [0, 0, 1, 1], [], []>} : vector<8x32xf32>, vector<32x128xf32>, vector<8x128xf32> -> vector<8x128xf32>
    %62 = vector.broadcast %6 : vector<1x128xf32> to vector<8x128xf32>
    %63 = arith.addf %61, %62 : vector<8x128xf32>
    %cst_25 = arith.constant 0.000000e+00 : f32
    %64 = vector.broadcast %cst_25 : f32 to vector<8x128xf32>
    %65 = arith.maximumf %63, %64 : vector<8x128xf32>
    %cst_26 = arith.constant dense<0.000000e+00> : vector<8x128xf32>
    %66 = tpu.matmul %65, %11, %cst_26 {dimension_numbers = #tpu.dot_dimension_numbers<[1], [0], [0], [1], [0, 0, 1, 1], [], []>} : vector<8x128xf32>, vector<128x128xf32>, vector<8x128xf32> -> vector<8x128xf32>
    %67 = vector.broadcast %7 : vector<1x128xf32> to vector<8x128xf32>
    %68 = arith.addf %66, %67 : vector<8x128xf32>
    %cst_27 = arith.constant 0.000000e+00 : f32
    %69 = vector.broadcast %cst_27 : f32 to vector<8x128xf32>
    %70 = arith.maximumf %68, %69 : vector<8x128xf32>
    %cst_28 = arith.constant dense<0.000000e+00> : vector<8x128xf32>
    %71 = tpu.matmul %70, %12, %cst_28 {dimension_numbers = #tpu.dot_dimension_numbers<[1], [0], [0], [1], [0, 0, 1, 1], [], []>} : vector<8x128xf32>, vector<128x128xf32>, vector<8x128xf32> -> vector<8x128xf32>
    %72 = vector.broadcast %8 : vector<1x128xf32> to vector<8x128xf32>
    %73 = arith.addf %71, %72 : vector<8x128xf32>
    %74 = tpu.iota {dimensions = array<i32: 1>} : vector<8x128xi32>
    %c8_i32 = arith.constant 8 : i32
    %75 = vector.broadcast %c8_i32 : i32 to vector<8x128xi32>
    %76 = arith.cmpi sge, %74, %75 : vector<8x128xi32>
    %c10_i32 = arith.constant 10 : i32
    %77 = vector.broadcast %c10_i32 : i32 to vector<8x128xi32>
    %78 = arith.cmpi slt, %74, %77 : vector<8x128xi32>
    %79 = arith.andi %76, %78 : vector<8x128xi1>
    %80 = arith.negf %73 : vector<8x128xf32>
    %81 = math.exp %80 : vector<8x128xf32>
    %cst_29 = arith.constant 1.000000e+00 : f32
    %82 = vector.broadcast %cst_29 : f32 to vector<8x128xf32>
    %83 = arith.addf %82, %81 : vector<8x128xf32>
    %84 = arith.divf %82, %83 : vector<8x128xf32>
    %85 = arith.select %79, %84, %73 : vector<8x128xi1>, vector<8x128xf32>
    %c0_30 = arith.constant 0 : index
    %c0_31 = arith.constant 0 : index
    %86 = vector.load %arg3[%c0_30, %c0_31] : memref<8x128xf32, #tpu.memory_space<vmem>>, vector<8x128xf32>
    tpu.vector_store %arg3[%c0_30, %c0_31], %85 {strides = array<i32>} : memref<8x128xf32, #tpu.memory_space<vmem>>, vector<8x128xf32>,
    return
  }
  func.func @transform_0(%arg0: i32) -> (i32, i32, i32) {
    %c0_i32 = arith.constant 0 : i32
    %c0_i32_0 = arith.constant 0 : i32
    %c0_i32_1 = arith.constant 0 : i32
    return %arg0, %c0_i32, %c0_i32_0 : i32, i32, i32
  }
  func.func @transform_1(%arg0: i32) -> (i32, i32) {
    %c0_i32 = arith.constant 0 : i32
    %c0_i32_0 = arith.constant 0 : i32
    %c0_i32_1 = arith.constant 0 : i32
    return %c0_i32, %c0_i32_0 : i32, i32
  }
  func.func @transform_2(%arg0: i32) -> (i32, i32) {
    %c0_i32 = arith.constant 0 : i32
    %c0_i32_0 = arith.constant 0 : i32
    return %arg0, %c0_i32 : i32, i32
  }
}

</mosaic_0001>

<llo_original>
// kernel: tpu_custom_call.1
$region0: #{tpu_custom_call.1}
  #allocation0 [shape = 'u32[]', space=smem, size = 0x4, offset = 0x4, fixed_abs, tag = 'smem constant byte address 0x4 - core index']
  #allocation1 [shape = 'u32[144,128]{1,0:T(1,128)}', space=vmem, size = 0x12000, scoped, tag = 'internal scratch']
  %s0 = inlined_call_operand.hbm [shape: f32[8,8,32], index: 0, kind: input, shape index: {}]
  %s1 = inlined_call_operand.hbm [shape: f32[328,128], index: 1, kind: input, shape index: {}]
  %s2 = inlined_call_operand.hbm [shape: f32[8,128], index: 2, kind: output, shape index: {}]
  %s3 = sld [smem:[#allocation0]]
  $region26: #{tpu_custom_call.1} parent=0
    _
  %s5 = ssub.s32 1, %s3
  %s6 = scalar_select 0, %s5, %s3
  $region1: #{tpu_custom_call.1} parent=0
    #allocation2 [shape = 'u8[32768]{0}', space=vmem, size = 0x8000, scoped, tag = 'input window, operand 0, single buffered']
    #allocation3 [shape = 's32[1]{0}', space=sflag, size = 0x4, scoped, tag = 'scoped memory for tpu_custom_call.1']
    #allocation4 [shape = 's32[1]{0}', space=sflag, size = 0x4, scoped, tag = 'scoped memory for tpu_custom_call.1']
    #allocation5 [shape = 'u8[167936]{0}', space=vmem, size = 0x29000, scoped, tag = 'input window, operand 1, single buffered']
    #allocation6 [shape = 's32[1]{0}', space=sflag, size = 0x4, scoped, tag = 'scoped memory for tpu_custom_call.1']
    #allocation7 [shape = 'u8[4096]{0}', space=vmem, size = 0x1000, scoped, tag = 'output window, operand 0, single buffered']
    %7 = vsyncpa [#allocation3], 0
    %8 = vsyncpa [#allocation6], 0
    %9 = vsyncpa [#allocation4], 0
    // Predicated region
    $region2: #{tpu_custom_call.1} parent=1 // pred_check
      _
    $region3: #{tpu_custom_call.1} parent=1 // pred_check_branch
      %11 = sbr.rel (0) target = $region5
    $region4: #{tpu_custom_call.1} parent=1 // pred_region
      %s13 = ssub.s32 1024, 1024
      %14 = vsyncadd [#allocation3], %s13
      %s15 = sshll.u32 [#allocation2], 4
      %s16 = int_to_ptr.vmem [resolvable:$true] %s15
      %21 = dma.hbm_to_vmem [thread:$0]  %s0, 1024, %s16, [#allocation3], 128, 128, 8
    $region5: #{tpu_custom_call.1} parent=1 // pred_fallthru
      _
    // Predicated region
    $region6: #{tpu_custom_call.1} parent=1 // pred_check
      _
    $region7: #{tpu_custom_call.1} parent=1 // pred_check_branch
      %23 = sbr.rel (0) target = $region9
    $region8: #{tpu_custom_call.1} parent=1 // pred_region
      %s25 = ssub.s32 5248, 5248
      %26 = vsyncadd [#allocation6], %s25
      %s27 = sshll.u32 [#allocation5], 4
      %s28 = int_to_ptr.vmem [resolvable:$true] %s27
      %33 = dma.hbm_to_vmem [thread:$0]  %s1, 5248, %s28, [#allocation6], 128, 128, 8
    $region9: #{tpu_custom_call.1} parent=1 // pred_fallthru
      _
    // Predicated region
    $region10: #{tpu_custom_call.1} parent=1 // pred_check
      _
    $region11: #{tpu_custom_call.1} parent=1 // pred_check_branch
      %35 = sbr.rel (0) target = $region13
    $region12: #{tpu_custom_call.1} parent=1 // pred_region
      %36 = dma.done [#allocation3], 1024
    $region13: #{tpu_custom_call.1} parent=1 // pred_fallthru
      _
    // Predicated region
    $region14: #{tpu_custom_call.1} parent=1 // pred_check
      _
    $region15: #{tpu_custom_call.1} parent=1 // pred_check_branch
      %38 = sbr.rel (0) target = $region17
    $region16: #{tpu_custom_call.1} parent=1 // pred_region
      %39 = dma.done [#allocation6], 5248
    $region17: #{tpu_custom_call.1} parent=1 // pred_fallthru
      _
    %v40 = vld [vmem:[#allocation2] sm:$0xff]
    %v41 = vld [vmem:[#allocation2 + $0x8] sm:$0xff]
    %v42 = vld [vmem:[#allocation2 + $0x10] sm:$0xff]
    %v43 = vld [vmem:[#allocation2 + $0x18] sm:$0xff]
    %v44 = vld [vmem:[#allocation2 + $0x20] sm:$0xff]
    %v45 = vld [vmem:[#allocation2 + $0x28] sm:$0xff]
    %v46 = vld [vmem:[#allocation2 + $0x30] sm:$0xff]
    %v47 = vld [vmem:[#allocation2 + $0x38] sm:$0xff]
    %v48 = vld [vmem:[#allocation5] sm:$0x1]
    %v49 = vld [vmem:[#allocation5 + $0x1] sm:$0x1]
    %v50 = vld [vmem:[#allocation5 + $0x2] sm:$0x1]
    %v51 = vld [vmem:[#allocation5 + $0x3] sm:$0x1]
    %v52 = vld [vmem:[#allocation5 + $0x4] sm:$0x1]
    %v53 = vld [vmem:[#allocation5 + $0x5] sm:$0x1]
    %v54 = vld [vmem:[#allocation5 + $0x6] sm:$0x1]
    %v55 = vld [vmem:[#allocation5 + $0x7] sm:$0x1]
    %v56 = vld [vmem:[#allocation5 + $0x8] sm:$0xff]
    %v57 = vld [vmem:[#allocation5 + $0x10] sm:$0xff]
    %v58 = vld [vmem:[#allocation5 + $0x18] sm:$0xff]
    %v59 = vld [vmem:[#allocation5 + $0x20] sm:$0xff]
    %v60 = vld [vmem:[#allocation5 + $0x28] sm:$0xff]
    %v61 = vld [vmem:[#allocation5 + $0x30] sm:$0xff]
    %v62 = vld [vmem:[#allocation5 + $0x38] sm:$0xff]
    %v63 = vld [vmem:[#allocation5 + $0x40] sm:$0xff]
    %v64 = vld [vmem:[#allocation5 + $0x48] sm:$0xff]
    %v65 = vld [vmem:[#allocation5 + $0x50] sm:$0xff]
    %v66 = vld [vmem:[#allocation5 + $0x58] sm:$0xff]
    %v67 = vld [vmem:[#allocation5 + $0x60] sm:$0xff]
    %v68 = vld [vmem:[#allocation5 + $0x68] sm:$0xff]
    %v69 = vld [vmem:[#allocation5 + $0x70] sm:$0xff]
    %v70 = vld [vmem:[#allocation5 + $0x78] sm:$0xff]
    %v71 = vld [vmem:[#allocation5 + $0x80] sm:$0xff]
    %v72 = vld [vmem:[#allocation5 + $0x88] sm:$0xff]
    %v73 = vld [vmem:[#allocation5 + $0x90] sm:$0xff]
    %v74 = vld [vmem:[#allocation5 + $0x98] sm:$0xff]
    %v75 = vld [vmem:[#allocation5 + $0xa0] sm:$0xff]
    %v76 = vld [vmem:[#allocation5 + $0xa8] sm:$0xff]
    %v77 = vld [vmem:[#allocation5 + $0xb0] sm:$0xff]
    %v78 = vld [vmem:[#allocation5 + $0xb8] sm:$0xff]
    %v79 = vld [vmem:[#allocation5 + $0xc0] sm:$0xff]
    %v80 = vld [vmem:[#allocation5 + $0xc8] sm:$0xff]
    %v81 = vld [vmem:[#allocation5 + $0xd0] sm:$0xff]
    %v82 = vld [vmem:[#allocation5 + $0xd8] sm:$0xff]
    %v83 = vld [vmem:[#allocation5 + $0xe0] sm:$0xff]
    %v84 = vld [vmem:[#allocation5 + $0xe8] sm:$0xff]
    %v85 = vld [vmem:[#allocation5 + $0xf0] sm:$0xff]
    %v86 = vld [vmem:[#allocation5 + $0xf8] sm:$0xff]
    %v87 = vld [vmem:[#allocation5 + $0x100] sm:$0xff]
    %v88 = vld [vmem:[#allocation5 + $0x108] sm:$0xff]
    %v89 = vld [vmem:[#allocation5 + $0x110] sm:$0xff]
    %v90 = vld [vmem:[#allocation5 + $0x118] sm:$0xff]
    %v91 = vld [vmem:[#allocation5 + $0x120] sm:$0xff]
    %v92 = vld [vmem:[#allocation5 + $0x128] sm:$0xff]
    %v93 = vld [vmem:[#allocation5 + $0x130] sm:$0xff]
    %v94 = vld [vmem:[#allocation5 + $0x138] sm:$0xff]
    %v95 = vld [vmem:[#allocation5 + $0x140] sm:$0xff]
    %vm96 = vcmask 261120
    %v97 = vsel %vm96, %v40, 0.0
    %98 = vadd.xlane.f32.xlu0 %v97
    %v99 = vpop.xlane.xlu0 %98
    %v100 = vsel %vm96, %v41, 0.0
    %101 = vadd.xlane.f32.xlu0 %v100
    %v102 = vpop.xlane.xlu0 %101
    %v103 = vsel %vm96, %v42, 0.0
    %104 = vadd.xlane.f32.xlu0 %v103
    %v105 = vpop.xlane.xlu0 %104
    %v106 = vsel %vm96, %v43, 0.0
    %107 = vadd.xlane.f32.xlu0 %v106
    %v108 = vpop.xlane.xlu0 %107
    %v109 = vsel %vm96, %v44, 0.0
    %110 = vadd.xlane.f32.xlu0 %v109
    %v111 = vpop.xlane.xlu0 %110
    %v112 = vsel %vm96, %v45, 0.0
    %113 = vadd.xlane.f32.xlu0 %v112
    %v114 = vpop.xlane.xlu0 %113
    %v115 = vsel %vm96, %v46, 0.0
    %116 = vadd.xlane.f32.xlu0 %v115
    %v117 = vpop.xlane.xlu0 %116
    %v118 = vsel %vm96, %v47, 0.0
    %119 = vadd.xlane.f32.xlu0 %v118
    %v120 = vpop.xlane.xlu0 %119
    %v121 = vrcp.pop 32.0
    %v122 = vmul.f32 %v99, %v121
    %v123 = vmul.f32 %v102, %v121
    %v124 = vmul.f32 %v105, %v121
    %v125 = vmul.f32 %v108, %v121
    %v126 = vmul.f32 %v111, %v121
    %v127 = vmul.f32 %v114, %v121
    %v128 = vmul.f32 %v117, %v121
    %v129 = vmul.f32 %v120, %v121
    %v130 = vsub.f32 %v40, %v122
    %v131 = vsub.f32 %v41, %v123
    %v132 = vsub.f32 %v42, %v124
    %v133 = vsub.f32 %v43, %v125
    %v134 = vsub.f32 %v44, %v126
    %v135 = vsub.f32 %v45, %v127
    %v136 = vsub.f32 %v46, %v128
    %v137 = vsub.f32 %v47, %v129
    %v138 = vmul.f32 %v130, %v130
    %v139 = vmul.f32 %v131, %v131
    %v140 = vmul.f32 %v132, %v132
    %v141 = vmul.f32 %v133, %v133
    %v142 = vmul.f32 %v134, %v134
    %v143 = vmul.f32 %v135, %v135
    %v144 = vmul.f32 %v136, %v136
    %v145 = vmul.f32 %v137, %v137
    %v146 = vsel %vm96, %v138, 0.0
    %147 = vadd.xlane.f32.xlu0 %v146
    %v148 = vpop.xlane.xlu0 %147
    %v149 = vsel %vm96, %v139, 0.0
    %150 = vadd.xlane.f32.xlu0 %v149
    %v151 = vpop.xlane.xlu0 %150
    %v152 = vsel %vm96, %v140, 0.0
    %153 = vadd.xlane.f32.xlu0 %v152
    %v154 = vpop.xlane.xlu0 %153
    %v155 = vsel %vm96, %v141, 0.0
    %156 = vadd.xlane.f32.xlu0 %v155
    %v157 = vpop.xlane.xlu0 %156
    %v158 = vsel %vm96, %v142, 0.0
    %159 = vadd.xlane.f32.xlu0 %v158
    %v160 = vpop.xlane.xlu0 %159
    %v161 = vsel %vm96, %v143, 0.0
    %162 = vadd.xlane.f32.xlu0 %v161
    %v163 = vpop.xlane.xlu0 %162
    %v164 = vsel %vm96, %v144, 0.0
    %165 = vadd.xlane.f32.xlu0 %v164
    %v166 = vpop.xlane.xlu0 %165
    %v167 = vsel %vm96, %v145, 0.0
    %168 = vadd.xlane.f32.xlu0 %v167
    %v169 = vpop.xlane.xlu0 %168
    %v170 = vmul.f32 %v148, %v121
    %v171 = vmul.f32 %v151, %v121
    %v172 = vmul.f32 %v154, %v121
    %v173 = vmul.f32 %v157, %v121
    %v174 = vmul.f32 %v160, %v121
    %v175 = vmul.f32 %v163, %v121
    %v176 = vmul.f32 %v166, %v121
    %v177 = vmul.f32 %v169, %v121
    %v178 = vadd.f32 %v170, 1e-05
    %v179 = vadd.f32 %v171, 1e-05
    %v180 = vadd.f32 %v172, 1e-05
    %v181 = vadd.f32 %v173, 1e-05
    %v182 = vadd.f32 %v174, 1e-05
    %v183 = vadd.f32 %v175, 1e-05
    %v184 = vadd.f32 %v176, 1e-05
    %v185 = vadd.f32 %v177, 1e-05
    %v186 = vrsqrt.pop %v178
    %v187 = vrsqrt.pop %v179
    %v188 = vrsqrt.pop %v180
    %v189 = vrsqrt.pop %v181
    %v190 = vrsqrt.pop %v182
    %v191 = vrsqrt.pop %v183
    %v192 = vrsqrt.pop %v184
    %v193 = vrsqrt.pop %v185
    %v194 = vmul.f32 %v130, %v186
    %v195 = vmul.f32 %v131, %v187
    %v196 = vmul.f32 %v132, %v188
    %v197 = vmul.f32 %v133, %v189
    %v198 = vmul.f32 %v134, %v190
    %v199 = vmul.f32 %v135, %v191
    %v200 = vmul.f32 %v136, %v192
    %v201 = vmul.f32 %v137, %v193
    %v202 = vlaneseq
    %v203 = vshrl.u32 %v202, 7
    %v204 = vsub.s32 0, %v203
    %v205 = vrot.slane %v48, %v204
    %v206 = vmul.f32 %v194, %v205
    %v207 = vmul.f32 %v195, %v205
    %v208 = vmul.f32 %v196, %v205
    %v209 = vmul.f32 %v197, %v205
    %v210 = vmul.f32 %v198, %v205
    %v211 = vmul.f32 %v199, %v205
    %v212 = vmul.f32 %v200, %v205
    %v213 = vmul.f32 %v201, %v205
    %v214 = vlaneseq
    %v215 = vshrl.u32 %v214, 7
    %v216 = vsub.s32 0, %v215
    %v217 = vrot.slane %v49, %v216
    %v218 = vadd.f32 %v206, %v217
    %v219 = vadd.f32 %v207, %v217
    %v220 = vadd.f32 %v208, %v217
    %v221 = vadd.f32 %v209, %v217
    %v222 = vadd.f32 %v210, %v217
    %v223 = vadd.f32 %v211, %v217
    %v224 = vadd.f32 %v212, %v217
    %v225 = vadd.f32 %v213, %v217
    %v226 = vlaneseq
    %v227 = vshrl.u32 %v226, 7
    %v228 = vsub.s32 0, %v227
    %v229 = vrot.slane %v50, %v228
    %v231 = vsel %vm96, %v218, 0
    %v234 = vsel %vm96, %v219, 0
    %v237 = vsel %vm96, %v220, 0
    %v240 = vsel %vm96, %v221, 0
    %v243 = vsel %vm96, %v222, 0
    %v246 = vsel %vm96, %v223, 0
    %v249 = vsel %vm96, %v224, 0
    %v252 = vsel %vm96, %v225, 0
    %254 = vmatprep.subr.mxu0 0.0
    %255 = vmatpush1.msra.mxu0 0.0
    %256 = vmatprep.subr.mxu0 0.0
    %257 = vmatpush1.msra.mxu0 0.0
    %258 = vmatprep.subr.mxu0 0.0
    %259 = vmatpush1.msra.mxu0 0.0
    %260 = vmatprep.subr.mxu0 0.0
    %261 = vmatpush1.msra.mxu0 0.0
    %262 = vmatprep.subr.mxu0 0.0
    %263 = vmatpush1.msra.mxu0 0.0
    %264 = vmatprep.subr.mxu0 0.0
    %265 = vmatpush1.msra.mxu0 0.0
    %266 = vmatprep.subr.mxu0 0.0
    %267 = vmatpush1.msra.mxu0 0.0
    %268 = vmatprep.subr.mxu0 0.0
    %269 = vmatpush1.msra.mxu0 0.0
    %270 = vmatprep.subr.mxu0 0.0
    %271 = vmatpush1.msra.mxu0 0.0
    %272 = vmatprep.subr.mxu0 0.0
    %273 = vmatpush1.msra.mxu0 0.0
    %274 = vmatprep.subr.mxu0 0.0
    %275 = vmatpush1.msra.mxu0 0.0
    %276 = vmatprep.subr.mxu0 0.0
    %277 = vmatpush1.msra.mxu0 0.0
    %278 = vmatprep.subr.mxu0 0.0
    %279 = vmatpush1.msra.mxu0 %v59
    %280 = vmatprep.subr.mxu0 0.0
    %281 = vmatpush1.msra.mxu0 %v58
    %282 = vmatprep.subr.mxu0 0.0
    %283 = vmatpush1.msra.mxu0 %v57
    %284 = vmatprep.subr.mxu0 0.0
    %285 = vmatpush1.msra.mxu0 %v56
    %286 = vmatprep.subr.mxu0 0.0
    %287 = vmatpush2.msra.mxu0 0.0
    %288 = vmatprep.subr.mxu0 0.0
    %289 = vmatpush2.msra.mxu0 0.0
    %290 = vmatprep.subr.mxu0 0.0
    %291 = vmatpush2.msra.mxu0 0.0
    %292 = vmatprep.subr.mxu0 0.0
    %293 = vmatpush2.msra.mxu0 0.0
    %294 = vmatprep.subr.mxu0 0.0
    %295 = vmatpush2.msra.mxu0 0.0
    %296 = vmatprep.subr.mxu0 0.0
    %297 = vmatpush2.msra.mxu0 0.0
    %298 = vmatprep.subr.mxu0 0.0
    %299 = vmatpush2.msra.mxu0 0.0
    %300 = vmatprep.subr.mxu0 0.0
    %301 = vmatpush2.msra.mxu0 0.0
    %302 = vmatprep.subr.mxu0 0.0
    %303 = vmatpush2.msra.mxu0 0.0
    %304 = vmatprep.subr.mxu0 0.0
    %305 = vmatpush2.msra.mxu0 0.0
    %306 = vmatprep.subr.mxu0 0.0
    %307 = vmatpush2.msra.mxu0 0.0
    %308 = vmatprep.subr.mxu0 0.0
    %309 = vmatpush2.msra.mxu0 0.0
    %310 = vmatprep.subr.mxu0 0.0
    %311 = vmatpush2.msra.mxu0 0.0
    %312 = vmatprep.subr.mxu0 0.0
    %313 = vmatpush2.msra.mxu0 0.0
    %314 = vmatprep.subr.mxu0 0.0
    %315 = vmatpush2.msra.mxu0 0.0
    %316 = vmatprep.subr.mxu0 0.0
    %317 = vmatpush2.msra.mxu0 0.0
    %318 = vmatprep.mubr.f32.mxu0 0.0
    %319 = vmatmul.mubr.f32.gmra.mxu0 %v231
    %v320 = vpop.f32.mrf.mxu0
    %v321 = vadd.f32 %v229, %v320
    %v322 = vpop.f32.mrf.mxu0
    %323 = vmatprep.mubr.f32.mxu0 0.0
    %324 = vmatmul.mubr.f32.gmra.mxu0 %v234
    %v325 = vpop.f32.mrf.mxu0
    %v326 = vadd.f32 %v229, %v325
    %v327 = vpop.f32.mrf.mxu0
    %328 = vmatprep.mubr.f32.mxu0 0.0
    %329 = vmatmul.mubr.f32.gmra.mxu0 %v237
    %v330 = vpop.f32.mrf.mxu0
    %v331 = vadd.f32 %v229, %v330
    %v332 = vpop.f32.mrf.mxu0
    %333 = vmatprep.mubr.f32.mxu0 0.0
    %334 = vmatmul.mubr.f32.gmra.mxu0 %v240
    %v335 = vpop.f32.mrf.mxu0
    %v336 = vadd.f32 %v229, %v335
    %v337 = vpop.f32.mrf.mxu0
    %338 = vmatprep.mubr.f32.mxu0 0.0
    %339 = vmatmul.mubr.f32.gmra.mxu0 %v243
    %v340 = vpop.f32.mrf.mxu0
    %v341 = vadd.f32 %v229, %v340
    %v342 = vpop.f32.mrf.mxu0
    %343 = vmatprep.mubr.f32.mxu0 0.0
    %344 = vmatmul.mubr.f32.gmra.mxu0 %v246
    %v345 = vpop.f32.mrf.mxu0
    %v346 = vadd.f32 %v229, %v345
    %v347 = vpop.f32.mrf.mxu0
    %348 = vmatprep.mubr.f32.mxu0 0.0
    %349 = vmatmul.mubr.f32.gmra.mxu0 %v249
    %v350 = vpop.f32.mrf.mxu0
    %v351 = vadd.f32 %v229, %v350
    %v352 = vpop.f32.mrf.mxu0
    %353 = vmatprep.mubr.f32.mxu0 0.0
    %354 = vmatmul.mubr.f32.gmra.mxu0 %v252
    %v355 = vpop.f32.mrf.mxu0
    %v356 = vadd.f32 %v229, %v355
    %v357 = vpop.f32.mrf.mxu0
    %358 = vdwg.mxu0
    %v359 = vtanh.pop %v321
    %v360 = vtanh.pop %v326
    %v361 = vtanh.pop %v331
    %v362 = vtanh.pop %v336
    %v363 = vtanh.pop %v341
    %v364 = vtanh.pop %v346
    %v365 = vtanh.pop %v351
    %v366 = vtanh.pop %v356
    %v367 = vlaneseq
    %v368 = vshrl.u32 %v367, 7
    %v369 = vsub.s32 0, %v368
    %v370 = vrot.slane %v51, %v369
    %v371 = vmul.f32 %v359, %v370
    %v372 = vmul.f32 %v360, %v370
    %v373 = vmul.f32 %v361, %v370
    %v374 = vmul.f32 %v362, %v370
    %v375 = vmul.f32 %v363, %v370
    %v376 = vmul.f32 %v364, %v370
    %v377 = vmul.f32 %v365, %v370
    %v378 = vmul.f32 %v366, %v370
    %v379 = vsel %vm96, %v371, 0.0
    %380 = vadd.xlane.f32.xlu0 %v379
    %v381 = vpop.xlane.xlu0 %380
    %v382 = vsel %vm96, %v372, 0.0
    %383 = vadd.xlane.f32.xlu0 %v382
    %v384 = vpop.xlane.xlu0 %383
    %v385 = vsel %vm96, %v373, 0.0
    %386 = vadd.xlane.f32.xlu0 %v385
    %v387 = vpop.xlane.xlu0 %386
    %v388 = vsel %vm96, %v374, 0.0
    %389 = vadd.xlane.f32.xlu0 %v388
    %v390 = vpop.xlane.xlu0 %389
    %v391 = vsel %vm96, %v375, 0.0
    %392 = vadd.xlane.f32.xlu0 %v391
    %v393 = vpop.xlane.xlu0 %392
    %v394 = vsel %vm96, %v376, 0.0
    %395 = vadd.xlane.f32.xlu0 %v394
    %v396 = vpop.xlane.xlu0 %395
    %v397 = vsel %vm96, %v377, 0.0
    %398 = vadd.xlane.f32.xlu0 %v397
    %v399 = vpop.xlane.xlu0 %398
    %v400 = vsel %vm96, %v378, 0.0
    %401 = vadd.xlane.f32.xlu0 %v400
    %v402 = vpop.xlane.xlu0 %401
    %s404 = vtos %v52
    %v405 = vstv %s404
    %v407 = vadd.f32 %v381, %v405
    %v408 = vadd.f32 %v384, %v405
    %v409 = vadd.f32 %v387, %v405
    %v410 = vadd.f32 %v390, %v405
    %v411 = vadd.f32 %v393, %v405
    %v412 = vadd.f32 %v396, %v405
    %v413 = vadd.f32 %v399, %v405
    %v414 = vadd.f32 %v402, %v405
    %v423 = vlaneseq
    %v424 = vand.u32 %v423, 127
    %v425 = vlaneseq
    %v426 = vshrl.u32 %v425, 7
    %v427 = vsub.s32 %v424, %v426
    %v428 = vrot.slane %v407, %v427
    %v429 = vlaneseq
    %v430 = vshrl.u32 %v429, 7
    %v431 = vsub.s32 %v424, %v430
    %v432 = vrot.slane %v408, %v431
    %v433 = vlaneseq
    %v434 = vshrl.u32 %v433, 7
    %v435 = vsub.s32 %v424, %v434
    %v436 = vrot.slane %v409, %v435
    %v437 = vlaneseq
    %v438 = vshrl.u32 %v437, 7
    %v439 = vsub.s32 %v424, %v438
    %v440 = vrot.slane %v410, %v439
    %v441 = vlaneseq
    %v442 = vshrl.u32 %v441, 7
    %v443 = vsub.s32 %v424, %v442
    %v444 = vrot.slane %v411, %v443
    %v445 = vlaneseq
    %v446 = vshrl.u32 %v445, 7
    %v447 = vsub.s32 %v424, %v446
    %v448 = vrot.slane %v412, %v447
    %v449 = vlaneseq
    %v450 = vshrl.u32 %v449, 7
    %v451 = vsub.s32 %v424, %v450
    %v452 = vrot.slane %v413, %v451
    %v453 = vlaneseq
    %v454 = vshrl.u32 %v453, 7
    %v455 = vsub.s32 %v424, %v454
    %v456 = vrot.slane %v414, %v455
    %vm457 = vcmask 1041409
    %v458 = vsel %vm457, %v432, %v428
    %vm459 = vcmask 1042434
    %v460 = vsel %vm459, %v436, %v458
    %vm461 = vcmask 1043459
    %v462 = vsel %vm461, %v440, %v460
    %vm463 = vcmask 1044484
    %v464 = vsel %vm463, %v444, %v462
    %vm465 = vcmask 1045509
    %v466 = vsel %vm465, %v448, %v464
    %vm467 = vcmask 1046534
    %v468 = vsel %vm467, %v452, %v466
    %vm469 = vcmask 1047559
    %v470 = vsel %vm469, %v456, %v468
    %vm472 = vcmask 64512
    %v473 = vsel %vm472, %v470, -inf
    %474 = vmax.xlane.f32.xlu0 %v473
    %v475 = vpop.xlane.xlu0 %474
    %v477 = vlaneseq
    %v478 = vshrl.u32 %v477, 7
    %v479 = vsub.s32 0, %v478
    %v480 = vrot.slane %v475, %v479
    %v481 = vlaneseq
    %v482 = vshrl.u32 %v481, 7
    %v483 = vsub.s32 1, %v482
    %v484 = vrot.slane %v475, %v483
    %v485 = vlaneseq
    %v486 = vshrl.u32 %v485, 7
    %v487 = vsub.s32 2, %v486
    %v488 = vrot.slane %v475, %v487
    %v489 = vlaneseq
    %v490 = vshrl.u32 %v489, 7
    %v491 = vsub.s32 3, %v490
    %v492 = vrot.slane %v475, %v491
    %v493 = vlaneseq
    %v494 = vshrl.u32 %v493, 7
    %v495 = vsub.s32 4, %v494
    %v496 = vrot.slane %v475, %v495
    %v497 = vlaneseq
    %v498 = vshrl.u32 %v497, 7
    %v499 = vsub.s32 5, %v498
    %v500 = vrot.slane %v475, %v499
    %v501 = vlaneseq
    %v502 = vshrl.u32 %v501, 7
    %v503 = vsub.s32 6, %v502
    %v504 = vrot.slane %v475, %v503
    %v505 = vlaneseq
    %v506 = vshrl.u32 %v505, 7
    %v507 = vsub.s32 7, %v506
    %v508 = vrot.slane %v475, %v507
    %v517 = vsub.f32 %v407, %v480
    %v518 = vsub.f32 %v408, %v484
    %v519 = vsub.f32 %v409, %v488
    %v520 = vsub.f32 %v410, %v492
    %v521 = vsub.f32 %v411, %v496
    %v522 = vsub.f32 %v412, %v500
    %v523 = vsub.f32 %v413, %v504
    %v524 = vsub.f32 %v414, %v508
    %v525 = vmul.f32 %v517, 1.442695
    %v526 = vpow.pop %v525
    %v527 = vmul.f32 %v518, 1.442695
    %v528 = vpow.pop %v527
    %v529 = vmul.f32 %v519, 1.442695
    %v530 = vpow.pop %v529
    %v531 = vmul.f32 %v520, 1.442695
    %v532 = vpow.pop %v531
    %v533 = vmul.f32 %v521, 1.442695
    %v534 = vpow.pop %v533
    %v535 = vmul.f32 %v522, 1.442695
    %v536 = vpow.pop %v535
    %v537 = vmul.f32 %v523, 1.442695
    %v538 = vpow.pop %v537
    %v539 = vmul.f32 %v524, 1.442695
    %v540 = vpow.pop %v539
    %549 = vset.pattern.permute.xlu0 0
    %550 = vperm.xlu0 %549, %v526
    %v551 = vpop.permute.xlu0 %550
    %552 = vset.pattern.permute.xlu0 0
    %553 = vperm.xlu0 %552, %v528
    %v554 = vpop.permute.xlu0 %553
    %555 = vset.pattern.permute.xlu0 0
    %556 = vperm.xlu0 %555, %v530
    %v557 = vpop.permute.xlu0 %556
    %558 = vset.pattern.permute.xlu0 0
    %559 = vperm.xlu0 %558, %v532
    %v560 = vpop.permute.xlu0 %559
    %561 = vset.pattern.permute.xlu0 0
    %562 = vperm.xlu0 %561, %v534
    %v563 = vpop.permute.xlu0 %562
    %564 = vset.pattern.permute.xlu0 0
    %565 = vperm.xlu0 %564, %v536
    %v566 = vpop.permute.xlu0 %565
    %567 = vset.pattern.permute.xlu0 0
    %568 = vperm.xlu0 %567, %v538
    %v569 = vpop.permute.xlu0 %568
    %570 = vset.pattern.permute.xlu0 0
    %571 = vperm.xlu0 %570, %v540
    %v572 = vpop.permute.xlu0 %571
    %v573 = vlaneseq
    %v574 = vshrl.u32 %v573, 7
    %v575 = vsub.s32 %v424, %v574
    %v576 = vrot.slane %v551, %v575
    %v577 = vlaneseq
    %v578 = vshrl.u32 %v577, 7
    %v579 = vsub.s32 %v424, %v578
    %v580 = vrot.slane %v554, %v579
    %v581 = vlaneseq
    %v582 = vshrl.u32 %v581, 7
    %v583 = vsub.s32 %v424, %v582
    %v584 = vrot.slane %v557, %v583
    %v585 = vlaneseq
    %v586 = vshrl.u32 %v585, 7
    %v587 = vsub.s32 %v424, %v586
    %v588 = vrot.slane %v560, %v587
    %v589 = vlaneseq
    %v590 = vshrl.u32 %v589, 7
    %v591 = vsub.s32 %v424, %v590
    %v592 = vrot.slane %v563, %v591
    %v593 = vlaneseq
    %v594 = vshrl.u32 %v593, 7
    %v595 = vsub.s32 %v424, %v594
    %v596 = vrot.slane %v566, %v595
    %v597 = vlaneseq
    %v598 = vshrl.u32 %v597, 7
    %v599 = vsub.s32 %v424, %v598
    %v600 = vrot.slane %v569, %v599
    %v601 = vlaneseq
    %v602 = vshrl.u32 %v601, 7
    %v603 = vsub.s32 %v424, %v602
    %v604 = vrot.slane %v572, %v603
    %v605 = vsel %vm457, %v580, %v576
    %v606 = vsel %vm459, %v584, %v605
    %v607 = vsel %vm461, %v588, %v606
    %v608 = vsel %vm463, %v592, %v607
    %v609 = vsel %vm465, %v596, %v608
    %v610 = vsel %vm467, %v600, %v609
    %v611 = vsel %vm469, %v604, %v610
    %v613 = vsel %vm472, %v611, 0.0
    %614 = vadd.xlane.f32.xlu0 %v613
    %v615 = vpop.xlane.xlu0 %614
    %v617 = vlaneseq
    %v618 = vshrl.u32 %v617, 7
    %v619 = vsub.s32 0, %v618
    %v620 = vrot.slane %v615, %v619
    %v621 = vlaneseq
    %v622 = vshrl.u32 %v621, 7
    %v623 = vsub.s32 1, %v622
    %v624 = vrot.slane %v615, %v623
    %v625 = vlaneseq
    %v626 = vshrl.u32 %v625, 7
    %v627 = vsub.s32 2, %v626
    %v628 = vrot.slane %v615, %v627
    %v629 = vlaneseq
    %v630 = vshrl.u32 %v629, 7
    %v631 = vsub.s32 3, %v630
    %v632 = vrot.slane %v615, %v631
    %v633 = vlaneseq
    %v634 = vshrl.u32 %v633, 7
    %v635 = vsub.s32 4, %v634
    %v636 = vrot.slane %v615, %v635
    %v637 = vlaneseq
    %v638 = vshrl.u32 %v637, 7
    %v639 = vsub.s32 5, %v638
    %v640 = vrot.slane %v615, %v639
    %v641 = vlaneseq
    %v642 = vshrl.u32 %v641, 7
    %v643 = vsub.s32 6, %v642
    %v644 = vrot.slane %v615, %v643
    %v645 = vlaneseq
    %v646 = vshrl.u32 %v645, 7
    %v647 = vsub.s32 7, %v646
    %v648 = vrot.slane %v615, %v647
    %v657 = vrcp.pop %v620
    %v658 = vmul.f32 %v526, %v657
    %v659 = vrcp.pop %v624
    %v660 = vmul.f32 %v528, %v659
    %v661 = vrcp.pop %v628
    %v662 = vmul.f32 %v530, %v661
    %v663 = vrcp.pop %v632
    %v664 = vmul.f32 %v532, %v663
    %v665 = vrcp.pop %v636
    %v666 = vmul.f32 %v534, %v665
    %v667 = vrcp.pop %v640
    %v668 = vmul.f32 %v536, %v667
    %v669 = vrcp.pop %v644
    %v670 = vmul.f32 %v538, %v669
    %v671 = vrcp.pop %v648
    %v672 = vmul.f32 %v540, %v671
    %674 = vset.pattern.permute.xlu0 0
    %675 = vperm.xlu0 %674, %v658
    %v676 = vpop.permute.xlu0 %675
    %679 = vset.pattern.permute.xlu0 0
    %680 = vperm.xlu0 %679, %v660
    %v681 = vpop.permute.xlu0 %680
    %684 = vset.pattern.permute.xlu0 0
    %685 = vperm.xlu0 %684, %v662
    %v686 = vpop.permute.xlu0 %685
    %689 = vset.pattern.permute.xlu0 0
    %690 = vperm.xlu0 %689, %v664
    %v691 = vpop.permute.xlu0 %690
    %694 = vset.pattern.permute.xlu0 0
    %695 = vperm.xlu0 %694, %v666
    %v696 = vpop.permute.xlu0 %695
    %699 = vset.pattern.permute.xlu0 0
    %700 = vperm.xlu0 %699, %v668
    %v701 = vpop.permute.xlu0 %700
    %704 = vset.pattern.permute.xlu0 0
    %705 = vperm.xlu0 %704, %v670
    %v706 = vpop.permute.xlu0 %705
    %709 = vset.pattern.permute.xlu0 0
    %710 = vperm.xlu0 %709, %v672
    %v711 = vpop.permute.xlu0 %710
    %v713 = vmul.f32 %v676, %v218
    %v714 = vmul.f32 %v681, %v219
    %v715 = vmul.f32 %v686, %v220
    %v716 = vmul.f32 %v691, %v221
    %v717 = vmul.f32 %v696, %v222
    %v718 = vmul.f32 %v701, %v223
    %v719 = vmul.f32 %v706, %v224
    %v720 = vmul.f32 %v711, %v225
    %v721 = vsel %vm96, %v713, 0.0
    %v722 = vrot.slane %v721, 4
    %v723 = vadd.f32 %v721, %v722
    %v724 = vrot.slane %v723, 2
    %v725 = vadd.f32 %v723, %v724
    %v726 = vrot.slane %v725, 1
    %v727 = vadd.f32 %v725, %v726
    %v728 = vsel %vm96, %v714, 0.0
    %v729 = vrot.slane %v728, 4
    %v730 = vadd.f32 %v728, %v729
    %v731 = vrot.slane %v730, 2
    %v732 = vadd.f32 %v730, %v731
    %v733 = vrot.slane %v732, 1
    %v734 = vadd.f32 %v732, %v733
    %v735 = vsel %vm96, %v715, 0.0
    %v736 = vrot.slane %v735, 4
    %v737 = vadd.f32 %v735, %v736
    %v738 = vrot.slane %v737, 2
    %v739 = vadd.f32 %v737, %v738
    %v740 = vrot.slane %v739, 1
    %v741 = vadd.f32 %v739, %v740
    %v742 = vsel %vm96, %v716, 0.0
    %v743 = vrot.slane %v742, 4
    %v744 = vadd.f32 %v742, %v743
    %v745 = vrot.slane %v744, 2
    %v746 = vadd.f32 %v744, %v745
    %v747 = vrot.slane %v746, 1
    %v748 = vadd.f32 %v746, %v747
    %v749 = vsel %vm96, %v717, 0.0
    %v750 = vrot.slane %v749, 4
    %v751 = vadd.f32 %v749, %v750
    %v752 = vrot.slane %v751, 2
    %v753 = vadd.f32 %v751, %v752
    %v754 = vrot.slane %v753, 1
    %v755 = vadd.f32 %v753, %v754
    %v756 = vsel %vm96, %v718, 0.0
    %v757 = vrot.slane %v756, 4
    %v758 = vadd.f32 %v756, %v757
    %v759 = vrot.slane %v758, 2
    %v760 = vadd.f32 %v758, %v759
    %v761 = vrot.slane %v760, 1
    %v762 = vadd.f32 %v760, %v761
    %v763 = vsel %vm96, %v719, 0.0
    %v764 = vrot.slane %v763, 4
    %v765 = vadd.f32 %v763, %v764
    %v766 = vrot.slane %v765, 2
    %v767 = vadd.f32 %v765, %v766
    %v768 = vrot.slane %v767, 1
    %v769 = vadd.f32 %v767, %v768
    %v770 = vsel %vm96, %v720, 0.0
    %v771 = vrot.slane %v770, 4
    %v772 = vadd.f32 %v770, %v771
    %v773 = vrot.slane %v772, 2
    %v774 = vadd.f32 %v772, %v773
    %v775 = vrot.slane %v774, 1
    %v776 = vadd.f32 %v774, %v775
    %v777 = vlaneseq
    %v778 = vshrl.u32 %v777, 7
    %v779 = vsub.s32 0, %v778
    %v780 = vrot.slane %v53, %v779
    %v789 = vsel %vm457, %v734, %v727
    %v790 = vsel %vm459, %v741, %v789
    %v791 = vsel %vm461, %v748, %v790
    %v792 = vsel %vm463, %v755, %v791
    %v793 = vsel %vm465, %v762, %v792
    %v794 = vsel %vm467, %v769, %v793
    %v795 = vsel %vm469, %v776, %v794
    %v796 = vsel %vm96, %v795, 0
    %798 = vmatprep.subr.mxu0 0.0
    %799 = vmatpush1.msra.mxu0 0.0
    %800 = vmatprep.subr.mxu0 0.0
    %801 = vmatpush1.msra.mxu0 0.0
    %802 = vmatprep.subr.mxu0 0.0
    %803 = vmatpush1.msra.mxu0 0.0
    %804 = vmatprep.subr.mxu0 0.0
    %805 = vmatpush1.msra.mxu0 0.0
    %806 = vmatprep.subr.mxu0 0.0
    %807 = vmatpush1.msra.mxu0 0.0
    %808 = vmatprep.subr.mxu0 0.0
    %809 = vmatpush1.msra.mxu0 0.0
    %810 = vmatprep.subr.mxu0 0.0
    %811 = vmatpush1.msra.mxu0 0.0
    %812 = vmatprep.subr.mxu0 0.0
    %813 = vmatpush1.msra.mxu0 0.0
    %814 = vmatprep.subr.mxu0 0.0
    %815 = vmatpush1.msra.mxu0 0.0
    %816 = vmatprep.subr.mxu0 0.0
    %817 = vmatpush1.msra.mxu0 0.0
    %818 = vmatprep.subr.mxu0 0.0
    %819 = vmatpush1.msra.mxu0 0.0
    %820 = vmatprep.subr.mxu0 0.0
    %821 = vmatpush1.msra.mxu0 0.0
    %822 = vmatprep.subr.mxu0 0.0
    %823 = vmatpush1.msra.mxu0 %v63
    %824 = vmatprep.subr.mxu0 0.0
    %825 = vmatpush1.msra.mxu0 %v62
    %826 = vmatprep.subr.mxu0 0.0
    %827 = vmatpush1.msra.mxu0 %v61
    %828 = vmatprep.subr.mxu0 0.0
    %829 = vmatpush1.msra.mxu0 %v60
    %830 = vmatprep.subr.mxu0 0.0
    %831 = vmatpush2.msra.mxu0 0.0
    %832 = vmatprep.subr.mxu0 0.0
    %833 = vmatpush2.msra.mxu0 0.0
    %834 = vmatprep.subr.mxu0 0.0
    %835 = vmatpush2.msra.mxu0 0.0
    %836 = vmatprep.subr.mxu0 0.0
    %837 = vmatpush2.msra.mxu0 0.0
    %838 = vmatprep.subr.mxu0 0.0
    %839 = vmatpush2.msra.mxu0 0.0
    %840 = vmatprep.subr.mxu0 0.0
    %841 = vmatpush2.msra.mxu0 0.0
    %842 = vmatprep.subr.mxu0 0.0
    %843 = vmatpush2.msra.mxu0 0.0
    %844 = vmatprep.subr.mxu0 0.0
    %845 = vmatpush2.msra.mxu0 0.0
    %846 = vmatprep.subr.mxu0 0.0
    %847 = vmatpush2.msra.mxu0 0.0
    %848 = vmatprep.subr.mxu0 0.0
    %849 = vmatpush2.msra.mxu0 0.0
    %850 = vmatprep.subr.mxu0 0.0
    %851 = vmatpush2.msra.mxu0 0.0
    %852 = vmatprep.subr.mxu0 0.0
    %853 = vmatpush2.msra.mxu0 0.0
    %854 = vmatprep.subr.mxu0 0.0
    %855 = vmatpush2.msra.mxu0 0.0
    %856 = vmatprep.subr.mxu0 0.0
    %857 = vmatpush2.msra.mxu0 0.0
    %858 = vmatprep.subr.mxu0 0.0
    %859 = vmatpush2.msra.mxu0 0.0
    %860 = vmatprep.subr.mxu0 0.0
    %861 = vmatpush2.msra.mxu0 0.0
    %862 = vmatprep.mubr.f32.mxu0 0.0
    %863 = vmatmul.mubr.f32.gmra.mxu0 %v796
    %v864 = vpop.f32.mrf.mxu0
    %v865 = vadd.f32 %v780, %v864
    %v866 = vpop.f32.mrf.mxu0
    %867 = vdwg.mxu0
    %v868 = vmax.f32 %v865, 0.0
    %v869 = vlaneseq
    %v870 = vshrl.u32 %v869, 7
    %v871 = vsub.s32 0, %v870
    %v872 = vrot.slane %v54, %v871
    %873 = vmatprep.subr.mxu0 0.0
    %874 = vmatpush1.msra.mxu0 %v79
    %875 = vmatprep.subr.mxu0 0.0
    %876 = vmatpush1.msra.mxu0 %v78
    %877 = vmatprep.subr.mxu0 0.0
    %878 = vmatpush1.msra.mxu0 %v77
    %879 = vmatprep.subr.mxu0 0.0
    %880 = vmatpush1.msra.mxu0 %v76
    %881 = vmatprep.subr.mxu0 0.0
    %882 = vmatpush1.msra.mxu0 %v75
    %883 = vmatprep.subr.mxu0 0.0
    %884 = vmatpush1.msra.mxu0 %v74
    %885 = vmatprep.subr.mxu0 0.0
    %886 = vmatpush1.msra.mxu0 %v73
    %887 = vmatprep.subr.mxu0 0.0
    %888 = vmatpush1.msra.mxu0 %v72
    %889 = vmatprep.subr.mxu0 0.0
    %890 = vmatpush1.msra.mxu0 %v71
    %891 = vmatprep.subr.mxu0 0.0
    %892 = vmatpush1.msra.mxu0 %v70
    %893 = vmatprep.subr.mxu0 0.0
    %894 = vmatpush1.msra.mxu0 %v69
    %895 = vmatprep.subr.mxu0 0.0
    %896 = vmatpush1.msra.mxu0 %v68
    %897 = vmatprep.subr.mxu0 0.0
    %898 = vmatpush1.msra.mxu0 %v67
    %899 = vmatprep.subr.mxu0 0.0
    %900 = vmatpush1.msra.mxu0 %v66
    %901 = vmatprep.subr.mxu0 0.0
    %902 = vmatpush1.msra.mxu0 %v65
    %903 = vmatprep.subr.mxu0 0.0
    %904 = vmatpush1.msra.mxu0 %v64
    %905 = vmatprep.subr.mxu0 0.0
    %906 = vmatpush2.msra.mxu0 0.0
    %907 = vmatprep.subr.mxu0 0.0
    %908 = vmatpush2.msra.mxu0 0.0
    %909 = vmatprep.subr.mxu0 0.0
    %910 = vmatpush2.msra.mxu0 0.0
    %911 = vmatprep.subr.mxu0 0.0
    %912 = vmatpush2.msra.mxu0 0.0
    %913 = vmatprep.subr.mxu0 0.0
    %914 = vmatpush2.msra.mxu0 0.0
    %915 = vmatprep.subr.mxu0 0.0
    %916 = vmatpush2.msra.mxu0 0.0
    %917 = vmatprep.subr.mxu0 0.0
    %918 = vmatpush2.msra.mxu0 0.0
    %919 = vmatprep.subr.mxu0 0.0
    %920 = vmatpush2.msra.mxu0 0.0
    %921 = vmatprep.subr.mxu0 0.0
    %922 = vmatpush2.msra.mxu0 0.0
    %923 = vmatprep.subr.mxu0 0.0
    %924 = vmatpush2.msra.mxu0 0.0
    %925 = vmatprep.subr.mxu0 0.0
    %926 = vmatpush2.msra.mxu0 0.0
    %927 = vmatprep.subr.mxu0 0.0
    %928 = vmatpush2.msra.mxu0 0.0
    %929 = vmatprep.subr.mxu0 0.0
    %930 = vmatpush2.msra.mxu0 0.0
    %931 = vmatprep.subr.mxu0 0.0
    %932 = vmatpush2.msra.mxu0 0.0
    %933 = vmatprep.subr.mxu0 0.0
    %934 = vmatpush2.msra.mxu0 0.0
    %935 = vmatprep.subr.mxu0 0.0
    %936 = vmatpush2.msra.mxu0 0.0
    %937 = vmatprep.mubr.f32.mxu0 0.0
    %938 = vmatmul.mubr.f32.gmra.mxu0 %v868
    %v939 = vpop.f32.mrf.mxu0
    %v940 = vadd.f32 %v872, %v939
    %v941 = vpop.f32.mrf.mxu0
    %942 = vdwg.mxu0
    %v943 = vmax.f32 %v940, 0.0
    %v944 = vlaneseq
    %v945 = vshrl.u32 %v944, 7
    %v946 = vsub.s32 0, %v945
    %v947 = vrot.slane %v55, %v946
    %948 = vmatprep.subr.mxu0 0.0
    %949 = vmatpush1.msra.mxu0 %v95
    %950 = vmatprep.subr.mxu0 0.0
    %951 = vmatpush1.msra.mxu0 %v94
    %952 = vmatprep.subr.mxu0 0.0
    %953 = vmatpush1.msra.mxu0 %v93
    %954 = vmatprep.subr.mxu0 0.0
    %955 = vmatpush1.msra.mxu0 %v92
    %956 = vmatprep.subr.mxu0 0.0
    %957 = vmatpush1.msra.mxu0 %v91
    %958 = vmatprep.subr.mxu0 0.0
    %959 = vmatpush1.msra.mxu0 %v90
    %960 = vmatprep.subr.mxu0 0.0
    %961 = vmatpush1.msra.mxu0 %v89
    %962 = vmatprep.subr.mxu0 0.0
    %963 = vmatpush1.msra.mxu0 %v88
    %964 = vmatprep.subr.mxu0 0.0
    %965 = vmatpush1.msra.mxu0 %v87
    %966 = vmatprep.subr.mxu0 0.0
    %967 = vmatpush1.msra.mxu0 %v86
    %968 = vmatprep.subr.mxu0 0.0
    %969 = vmatpush1.msra.mxu0 %v85
    %970 = vmatprep.subr.mxu0 0.0
    %971 = vmatpush1.msra.mxu0 %v84
    %972 = vmatprep.subr.mxu0 0.0
    %973 = vmatpush1.msra.mxu0 %v83
    %974 = vmatprep.subr.mxu0 0.0
    %975 = vmatpush1.msra.mxu0 %v82
    %976 = vmatprep.subr.mxu0 0.0
    %977 = vmatpush1.msra.mxu0 %v81
    %978 = vmatprep.subr.mxu0 0.0
    %979 = vmatpush1.msra.mxu0 %v80
    %980 = vmatprep.subr.mxu0 0.0
    %981 = vmatpush2.msra.mxu0 0.0
    %982 = vmatprep.subr.mxu0 0.0
    %983 = vmatpush2.msra.mxu0 0.0
    %984 = vmatprep.subr.mxu0 0.0
    %985 = vmatpush2.msra.mxu0 0.0
    %986 = vmatprep.subr.mxu0 0.0
    %987 = vmatpush2.msra.mxu0 0.0
    %988 = vmatprep.subr.mxu0 0.0
    %989 = vmatpush2.msra.mxu0 0.0
    %990 = vmatprep.subr.mxu0 0.0
    %991 = vmatpush2.msra.mxu0 0.0
    %992 = vmatprep.subr.mxu0 0.0
    %993 = vmatpush2.msra.mxu0 0.0
    %994 = vmatprep.subr.mxu0 0.0
    %995 = vmatpush2.msra.mxu0 0.0
    %996 = vmatprep.subr.mxu0 0.0
    %997 = vmatpush2.msra.mxu0 0.0
    %998 = vmatprep.subr.mxu0 0.0
    %999 = vmatpush2.msra.mxu0 0.0
    %1000 = vmatprep.subr.mxu0 0.0
    %1001 = vmatpush2.msra.mxu0 0.0
    %1002 = vmatprep.subr.mxu0 0.0
    %1003 = vmatpush2.msra.mxu0 0.0
    %1004 = vmatprep.subr.mxu0 0.0
    %1005 = vmatpush2.msra.mxu0 0.0
    %1006 = vmatprep.subr.mxu0 0.0
    %1007 = vmatpush2.msra.mxu0 0.0
    %1008 = vmatprep.subr.mxu0 0.0
    %1009 = vmatpush2.msra.mxu0 0.0
    %1010 = vmatprep.subr.mxu0 0.0
    %1011 = vmatpush2.msra.mxu0 0.0
    %1012 = vmatprep.mubr.f32.mxu0 0.0
    %1013 = vmatmul.mubr.f32.gmra.mxu0 %v943
    %v1014 = vpop.f32.mrf.mxu0
    %v1015 = vadd.f32 %v947, %v1014
    %v1016 = vpop.f32.mrf.mxu0
    %1017 = vdwg.mxu0
    %vm1018 = vcmp.ge.s32.totalorder %v424, 8
    %vm1019 = vcmp.lt.s32.totalorder %v424, 10
    %vm1020 = vmand %vm1018, %vm1019
    %v1021 = vxor.u32 %v1015, 2147483648
    %v1022 = vmul.f32 %v1021, 1.442695
    %v1023 = vpow.pop %v1022
    %v1024 = vadd.f32 %v1023, 1.0
    %v1025 = vrcp.pop %v1024
    %v1026 = vmul.f32 1.0, %v1025
    %v1027 = vsel %vm1020, %v1026, %v1015
    %1028 = vst [vmem:[#allocation7] sm:$0xff] %v1027
    // Predicated region
    $region18: #{tpu_custom_call.1} parent=1 // pred_check
      _
    $region19: #{tpu_custom_call.1} parent=1 // pred_check_branch
      %1030 = sbr.rel (0) target = $region21
    $region20: #{tpu_custom_call.1} parent=1 // pred_region
      %s1032 = ssub.s32 128, 128
      %1033 = vsyncadd [#allocation4], %s1032
      %s1035 = sshll.u32 [#allocation7], 4
      %s1036 = int_to_ptr.vmem [resolvable:$true] %s1035
      %1038 = dma.vmem_to_hbm [thread:$0]  %s1036, 128, %s2, [#allocation4]
    $region21: #{tpu_custom_call.1} parent=1 // pred_fallthru
      _
    // Predicated region
    $region22: #{tpu_custom_call.1} parent=1 // pred_check
      _
    $region23: #{tpu_custom_call.1} parent=1 // pred_check_branch
      %1040 = sbr.rel (0) target = $region25
    $region24: #{tpu_custom_call.1} parent=1 // pred_region
      %1041 = dma.done [#allocation4], 128
    $region25: #{tpu_custom_call.1} parent=1 // pred_fallthru
      _
    %1042 = vsyncpa [#allocation3], 1
    %1043 = vsyncpa [#allocation6], 1
    %1044 = vsyncpa [#allocation4], 1

</llo_original>
